<compile_context>
chip_gen: v7x
topology: tpu7x:2x2x1
jax: 0.10.0
libtpu: 0.0.40
codegen_flags: <defaults>
</compile_context>

<pallas_src>
import functools

import jax
import jax.numpy as jnp
from jax.experimental import pallas as pl
from jax.experimental.pallas import tpu as pltpu


def _leaky_relu(x, slope=0.1):
    # vmul + vmax is cheaper than cmp + select + mul.
    return jnp.maximum(x, slope * x)


def _round_up(n, m):
    return ((n + m - 1) // m) * m


def _mlp_kernel(x_ref,
                w1_ref, b1_ref,
                w2_ref, b2_ref,
                w3_ref, b3_ref,
                w4_ref, b4_ref,
                w5t_ref, b5_ref,
                o_ref):
    # x_ref: (1, T) f32, batch on lanes.  w2/w3/w4 are bf16 (out, in); biases
    # are f32 (out, 1); w5 pre-transposed to (H, 1); b5 is (1, 1).
    x = x_ref[...]                                                  # (1, T)

    # Layer 1: Linear(1, H). K=1 contraction -> VPU broadcast mul-add.
    h = _leaky_relu(w1_ref[...] * x + b1_ref[...])                  # (H, T) f32

    # Layers 2-4: (out, in) @ (in, T) on the MXU, bf16 operands, f32 accum.
    h = _leaky_relu(
        jnp.dot(w2_ref[...], h.astype(jnp.bfloat16),
                preferred_element_type=jnp.float32) + b2_ref[...])  # (2H, T)
    h = _leaky_relu(
        jnp.dot(w3_ref[...], h.astype(jnp.bfloat16),
                preferred_element_type=jnp.float32) + b3_ref[...])  # (2H, T)
    h = _leaky_relu(
        jnp.dot(w4_ref[...], h.astype(jnp.bfloat16),
                preferred_element_type=jnp.float32) + b4_ref[...])  # (H, T)

    # Layer 5: Linear(H, 1). N=1 contraction -> VPU mul + sublane reduce.
    y = jnp.sum(w5t_ref[...] * h, axis=0, keepdims=True) + b5_ref[...]  # (1, T)

    o_ref[...] = y.astype(o_ref.dtype)


def init_params(key, hidden_size=48, dtype=jnp.float32):
    """Deterministic init matching nn.Linear shapes (weight: (out,in), bias: (out,))."""
    dims = [1, hidden_size, hidden_size * 2, hidden_size * 2, hidden_size, 1]
    params = []
    for i in range(5):
        fan_in, fan_out = dims[i], dims[i + 1]
        key, kw, kb = jax.random.split(key, 3)
        bound = 1.0 / float(fan_in) ** 0.5
        w = jax.random.uniform(kw, (fan_out, fan_in), dtype, -bound, bound)  # torch layout
        b = jax.random.uniform(kb, (fan_out,), dtype, -bound, bound)
        params.append((w, b))
    return params


def _pick_tile(B, batch_tile):
    """Lane-aligned tile that ~divides round_up(B,128), with >=2 grid steps
    when the batch allows (dual-TC sharding on v7x), capped at 16384 columns
    to stay inside v7x's smaller VMEM."""
    bp128 = _round_up(B, 128)
    max_tile = min(max(int(batch_tile), 128), 16384)
    n_steps = -(-bp128 // max_tile)
    if n_steps == 1 and bp128 >= 256:
        n_steps = 2
    tile = _round_up(-(-bp128 // n_steps), 128)
    return tile, tile * n_steps


@functools.partial(jax.jit, static_argnames=("batch_tile",))
def subnetwork_forward(x, params, batch_tile=8192):
    """x: (B, 1) float32 -> (B, 1) float32."""
    B = x.shape[0]
    tile, Bp = _pick_tile(B, batch_tile)

    # Lane-dense layout: batch on the lane axis, padded to the tiled extent.
    x_row = x.reshape(1, B)
    if Bp != B:
        x_row = jnp.pad(x_row, ((0, 0), (0, Bp - B)))

    (w1, b1), (w2, b2), (w3, b3), (w4, b4), (w5, b5) = params
    f32, bf16 = jnp.float32, jnp.bfloat16
    flat = [
        w1.astype(f32), b1.reshape(-1, 1).astype(f32),        # (H,1), (H,1)
        w2.astype(bf16), b2.reshape(-1, 1).astype(f32),       # (2H,H) bf16, (2H,1)
        w3.astype(bf16), b3.reshape(-1, 1).astype(f32),       # (2H,2H) bf16, (2H,1)
        w4.astype(bf16), b4.reshape(-1, 1).astype(f32),       # (H,2H) bf16, (H,1)
        w5.T.astype(f32), b5.reshape(1, 1).astype(f32),       # (H,1), (1,1)
    ]

    grid = (Bp // tile,)
    x_spec = pl.BlockSpec((1, tile), lambda i: (0, i))
    out_spec = pl.BlockSpec((1, tile), lambda i: (0, i))
    # Params are full-array blocks with constant index maps -> stay resident
    # in VMEM across all grid steps (no re-fetch).
    param_specs = [pl.BlockSpec(p.shape, lambda i: (0, 0)) for p in flat]

    out_row = pl.pallas_call(
        _mlp_kernel,
        out_shape=jax.ShapeDtypeStruct((1, Bp), x.dtype),
        grid_spec=pltpu.PrefetchScalarGridSpec(
            num_scalar_prefetch=0,
            grid=grid,
            in_specs=[x_spec] + param_specs,
            out_specs=out_spec,
        ),
        compiler_params=pltpu.CompilerParams(
            dimension_semantics=("parallel",),
            vmem_limit_bytes=48 * 1024 * 1024,
        ),
    )(x_row, *flat)

    return out_row[0, :B].reshape(B, 1)


def subnetwork_reference(x, params, mxu_bf16=False):
    """Pure-JAX reference mirroring the torch module's math.

    mxu_bf16=True mirrors the kernel's bf16-operand / f32-accumulate matmuls."""
    (w1, b1), (w2, b2), (w3, b3), (w4, b4), (w5, b5) = params

    def dot(h, w):
        if mxu_bf16:
            return jnp.dot(h.astype(jnp.bfloat16), w.T.astype(jnp.bfloat16),
                           preferred_element_type=jnp.float32)
        return jnp.dot(h, w.T, preferred_element_type=jnp.float32)

    h = _leaky_relu(x * w1[:, 0] + b1)                       # Linear(1,H)
    h = _leaky_relu(dot(h, w2) + b2)
    h = _leaky_relu(dot(h, w3) + b3)
    h = _leaky_relu(dot(h, w4) + b4)
    return jnp.sum(h * w5[0], axis=1, keepdims=True) + b5    # Linear(H,1)


if __name__ == "__main__":
    key = jax.random.PRNGKey(0)
    k_params, k_x = jax.random.split(key)

    hidden_size = 48
    batch = 200  # deliberately NOT a multiple of 128 -> exercises padding + 2 grid steps

    params = init_params(k_params, hidden_size=hidden_size)
    x = jax.random.normal(k_x, (batch, 1), dtype=jnp.float32)

    out = jax.block_until_ready(subnetwork_forward(x, params))
    assert out.shape == (batch, 1)

    # Tight check against a reference that mirrors the kernel's bf16 MXU path.
    ref_matched = subnetwork_reference(x, params, mxu_bf16=True)
    err_matched = float(jnp.max(jnp.abs(out - ref_matched)))
    assert jnp.allclose(out, ref_matched, atol=1e-3, rtol=1e-3), \
        f"mismatch vs bf16-matched reference: {err_matched}"

    # Loose semantic check against the full-f32 reference (bf16 operand rounding).
    ref_f32 = subnetwork_reference(x, params, mxu_bf16=False)
    err_f32 = float(jnp.max(jnp.abs(out - ref_f32)))
    assert jnp.allclose(out, ref_f32, atol=5e-2, rtol=5e-2), \
        f"mismatch vs f32 reference: {err_f32}"

    print("KERNEL_OK")
</pallas_src>

<mosaic_0001>
module attributes {stable_mosaic.version = 11 : i64} {
  func.func @_mlp_kernel(%arg0: i32, %arg1: memref<1x128xf32, #tpu.memory_space<vmem>>, %arg2: memref<48x1xf32, #tpu.memory_space<vmem>>, %arg3: memref<48x1xf32, #tpu.memory_space<vmem>>, %arg4: memref<96x48xbf16, #tpu.memory_space<vmem>>, %arg5: memref<96x1xf32, #tpu.memory_space<vmem>>, %arg6: memref<96x96xbf16, #tpu.memory_space<vmem>>, %arg7: memref<96x1xf32, #tpu.memory_space<vmem>>, %arg8: memref<48x96xbf16, #tpu.memory_space<vmem>>, %arg9: memref<48x1xf32, #tpu.memory_space<vmem>>, %arg10: memref<48x1xf32, #tpu.memory_space<vmem>>, %arg11: memref<1x1xf32, #tpu.memory_space<vmem>>, %arg12: memref<1x128xf32, #tpu.memory_space<vmem>>) attributes {dimension_semantics = [#tpu.dimension_semantics<parallel>], iteration_bounds = array<i64: 2>, scalar_prefetch = 0 : i64, scratch_operands = 0 : i64, tpu.core_type = #tpu.core_type<tc>, window_params = [{transform_indices = @transform_0, window_bounds = array<i64: 1, 128>}, {pipeline_mode = #tpu.pipeline_mode<synchronous>, transform_indices = @transform_1, window_bounds = array<i64: 48, 1>}, {pipeline_mode = #tpu.pipeline_mode<synchronous>, transform_indices = @transform_2, window_bounds = array<i64: 48, 1>}, {pipeline_mode = #tpu.pipeline_mode<synchronous>, transform_indices = @transform_3, window_bounds = array<i64: 96, 48>}, {pipeline_mode = #tpu.pipeline_mode<synchronous>, transform_indices = @transform_4, window_bounds = array<i64: 96, 1>}, {pipeline_mode = #tpu.pipeline_mode<synchronous>, transform_indices = @transform_5, window_bounds = array<i64: 96, 96>}, {pipeline_mode = #tpu.pipeline_mode<synchronous>, transform_indices = @transform_6, window_bounds = array<i64: 96, 1>}, {pipeline_mode = #tpu.pipeline_mode<synchronous>, transform_indices = @transform_7, window_bounds = array<i64: 48, 96>}, {pipeline_mode = #tpu.pipeline_mode<synchronous>, transform_indices = @transform_8, window_bounds = array<i64: 48, 1>}, {pipeline_mode = #tpu.pipeline_mode<synchronous>, transform_indices = @transform_9, window_bounds = array<i64: 48, 1>}, {pipeline_mode = #tpu.pipeline_mode<synchronous>, transform_indices = @transform_10, window_bounds = array<i64: 1, 1>}, {transform_indices = @transform_11, window_bounds = array<i64: 1, 128>}]} {
    %c0 = arith.constant 0 : index
    %c0_0 = arith.constant 0 : index
    %0 = vector.load %arg1[%c0, %c0_0] : memref<1x128xf32, #tpu.memory_space<vmem>>, vector<1x128xf32>
    %c0_1 = arith.constant 0 : index
    %c0_2 = arith.constant 0 : index
    %1 = vector.load %arg2[%c0_1, %c0_2] : memref<48x1xf32, #tpu.memory_space<vmem>>, vector<48x1xf32>
    %2 = vector.broadcast %1 : vector<48x1xf32> to vector<48x128xf32>
    %3 = vector.broadcast %0 : vector<1x128xf32> to vector<48x128xf32>
    %4 = arith.mulf %2, %3 : vector<48x128xf32>
    %c0_3 = arith.constant 0 : index
    %c0_4 = arith.constant 0 : index
    %5 = vector.load %arg3[%c0_3, %c0_4] : memref<48x1xf32, #tpu.memory_space<vmem>>, vector<48x1xf32>
    %6 = vector.broadcast %5 : vector<48x1xf32> to vector<48x128xf32>
    %7 = arith.addf %4, %6 : vector<48x128xf32>
    %cst = arith.constant 1.000000e-01 : f32
    %8 = vector.broadcast %cst : f32 to vector<48x128xf32>
    %9 = arith.mulf %8, %7 : vector<48x128xf32>
    %10 = arith.maximumf %7, %9 : vector<48x128xf32>
    %c0_5 = arith.constant 0 : index
    %c0_6 = arith.constant 0 : index
    %11 = vector.load %arg4[%c0_5, %c0_6] : memref<96x48xbf16, #tpu.memory_space<vmem>>, vector<96x48xbf16>
    %12 = arith.truncf %10 : vector<48x128xf32> to vector<48x128xbf16>
    %cst_7 = arith.constant dense<0.000000e+00> : vector<96x128xf32>
    %13 = tpu.matmul %11, %12, %cst_7 {dimension_numbers = #tpu.dot_dimension_numbers<[1], [0], [0], [1], [0, 0, 1, 1], [], []>} : vector<96x48xbf16>, vector<48x128xbf16>, vector<96x128xf32> -> vector<96x128xf32>
    %c0_8 = arith.constant 0 : index
    %c0_9 = arith.constant 0 : index
    %14 = vector.load %arg5[%c0_8, %c0_9] : memref<96x1xf32, #tpu.memory_space<vmem>>, vector<96x1xf32>
    %15 = vector.broadcast %14 : vector<96x1xf32> to vector<96x128xf32>
    %16 = arith.addf %13, %15 : vector<96x128xf32>
    %cst_10 = arith.constant 1.000000e-01 : f32
    %17 = vector.broadcast %cst_10 : f32 to vector<96x128xf32>
    %18 = arith.mulf %17, %16 : vector<96x128xf32>
    %19 = arith.maximumf %16, %18 : vector<96x128xf32>
    %c0_11 = arith.constant 0 : index
    %c0_12 = arith.constant 0 : index
    %20 = vector.load %arg6[%c0_11, %c0_12] : memref<96x96xbf16, #tpu.memory_space<vmem>>, vector<96x96xbf16>
    %21 = arith.truncf %19 : vector<96x128xf32> to vector<96x128xbf16>
    %cst_13 = arith.constant dense<0.000000e+00> : vector<96x128xf32>
    %22 = tpu.matmul %20, %21, %cst_13 {dimension_numbers = #tpu.dot_dimension_numbers<[1], [0], [0], [1], [0, 0, 1, 1], [], []>} : vector<96x96xbf16>, vector<96x128xbf16>, vector<96x128xf32> -> vector<96x128xf32>
    %c0_14 = arith.constant 0 : index
    %c0_15 = arith.constant 0 : index
    %23 = vector.load %arg7[%c0_14, %c0_15] : memref<96x1xf32, #tpu.memory_space<vmem>>, vector<96x1xf32>
    %24 = vector.broadcast %23 : vector<96x1xf32> to vector<96x128xf32>
    %25 = arith.addf %22, %24 : vector<96x128xf32>
    %cst_16 = arith.constant 1.000000e-01 : f32
    %26 = vector.broadcast %cst_16 : f32 to vector<96x128xf32>
    %27 = arith.mulf %26, %25 : vector<96x128xf32>
    %28 = arith.maximumf %25, %27 : vector<96x128xf32>
    %c0_17 = arith.constant 0 : index
    %c0_18 = arith.constant 0 : index
    %29 = vector.load %arg8[%c0_17, %c0_18] : memref<48x96xbf16, #tpu.memory_space<vmem>>, vector<48x96xbf16>
    %30 = arith.truncf %28 : vector<96x128xf32> to vector<96x128xbf16>
    %cst_19 = arith.constant dense<0.000000e+00> : vector<48x128xf32>
    %31 = tpu.matmul %29, %30, %cst_19 {dimension_numbers = #tpu.dot_dimension_numbers<[1], [0], [0], [1], [0, 0, 1, 1], [], []>} : vector<48x96xbf16>, vector<96x128xbf16>, vector<48x128xf32> -> vector<48x128xf32>
    %c0_20 = arith.constant 0 : index
    %c0_21 = arith.constant 0 : index
    %32 = vector.load %arg9[%c0_20, %c0_21] : memref<48x1xf32, #tpu.memory_space<vmem>>, vector<48x1xf32>
    %33 = vector.broadcast %32 : vector<48x1xf32> to vector<48x128xf32>
    %34 = arith.addf %31, %33 : vector<48x128xf32>
    %cst_22 = arith.constant 1.000000e-01 : f32
    %35 = vector.broadcast %cst_22 : f32 to vector<48x128xf32>
    %36 = arith.mulf %35, %34 : vector<48x128xf32>
    %37 = arith.maximumf %34, %36 : vector<48x128xf32>
    %c0_23 = arith.constant 0 : index
    %c0_24 = arith.constant 0 : index
    %38 = vector.load %arg10[%c0_23, %c0_24] : memref<48x1xf32, #tpu.memory_space<vmem>>, vector<48x1xf32>
    %39 = vector.broadcast %38 : vector<48x1xf32> to vector<48x128xf32>
    %40 = arith.mulf %39, %37 : vector<48x128xf32>
    %cst_25 = arith.constant dense<0.000000e+00> : vector<128xf32>
    %41 = vector.multi_reduction <add>, %40, %cst_25 [0] : vector<48x128xf32> to vector<128xf32>
    %42 = vector.shape_cast %41 : vector<128xf32> to vector<1x128xf32>
    %c0_26 = arith.constant 0 : index
    %c0_27 = arith.constant 0 : index
    %43 = vector.load %arg11[%c0_26, %c0_27] : memref<1x1xf32, #tpu.memory_space<vmem>>, vector<1x1xf32>
    %44 = vector.broadcast %43 : vector<1x1xf32> to vector<1x128xf32>
    %45 = arith.addf %42, %44 : vector<1x128xf32>
    %c0_28 = arith.constant 0 : index
    %c0_29 = arith.constant 0 : index
    %46 = vector.load %arg12[%c0_28, %c0_29] : memref<1x128xf32, #tpu.memory_space<vmem>>, vector<1x128xf32>
    tpu.vector_store %arg12[%c0_28, %c0_29], %45 {strides = array<i32>} : memref<1x128xf32, #tpu.memory_space<vmem>>, vector<1x128xf32>,
    return
  }
  func.func @transform_0(%arg0: i32) -> (i32, i32) {
    %c0_i32 = arith.constant 0 : i32
    %c0_i32_0 = arith.constant 0 : i32
    return %c0_i32, %arg0 : i32, i32
  }
  func.func @transform_1(%arg0: i32) -> (i32, i32) {
    %c0_i32 = arith.constant 0 : i32
    %c0_i32_0 = arith.constant 0 : i32
    %c0_i32_1 = arith.constant 0 : i32
    return %c0_i32, %c0_i32_0 : i32, i32
  }
  func.func @transform_2(%arg0: i32) -> (i32, i32) {
    %c0_i32 = arith.constant 0 : i32
    %c0_i32_0 = arith.constant 0 : i32
    %c0_i32_1 = arith.constant 0 : i32
    return %c0_i32, %c0_i32_0 : i32, i32
  }
  func.func @transform_3(%arg0: i32) -> (i32, i32) {
    %c0_i32 = arith.constant 0 : i32
    %c0_i32_0 = arith.constant 0 : i32
    %c0_i32_1 = arith.constant 0 : i32
    return %c0_i32, %c0_i32_0 : i32, i32
  }
  func.func @transform_4(%arg0: i32) -> (i32, i32) {
    %c0_i32 = arith.constant 0 : i32
    %c0_i32_0 = arith.constant 0 : i32
    %c0_i32_1 = arith.constant 0 : i32
    return %c0_i32, %c0_i32_0 : i32, i32
  }
  func.func @transform_5(%arg0: i32) -> (i32, i32) {
    %c0_i32 = arith.constant 0 : i32
    %c0_i32_0 = arith.constant 0 : i32
    %c0_i32_1 = arith.constant 0 : i32
    return %c0_i32, %c0_i32_0 : i32, i32
  }
  func.func @transform_6(%arg0: i32) -> (i32, i32) {
    %c0_i32 = arith.constant 0 : i32
    %c0_i32_0 = arith.constant 0 : i32
    %c0_i32_1 = arith.constant 0 : i32
    return %c0_i32, %c0_i32_0 : i32, i32
  }
  func.func @transform_7(%arg0: i32) -> (i32, i32) {
    %c0_i32 = arith.constant 0 : i32
    %c0_i32_0 = arith.constant 0 : i32
    %c0_i32_1 = arith.constant 0 : i32
    return %c0_i32, %c0_i32_0 : i32, i32
  }
  func.func @transform_8(%arg0: i32) -> (i32, i32) {
    %c0_i32 = arith.constant 0 : i32
    %c0_i32_0 = arith.constant 0 : i32
    %c0_i32_1 = arith.constant 0 : i32
    return %c0_i32, %c0_i32_0 : i32, i32
  }
  func.func @transform_9(%arg0: i32) -> (i32, i32) {
    %c0_i32 = arith.constant 0 : i32
    %c0_i32_0 = arith.constant 0 : i32
    %c0_i32_1 = arith.constant 0 : i32
    return %c0_i32, %c0_i32_0 : i32, i32
  }
  func.func @transform_10(%arg0: i32) -> (i32, i32) {
    %c0_i32 = arith.constant 0 : i32
    %c0_i32_0 = arith.constant 0 : i32
    %c0_i32_1 = arith.constant 0 : i32
    return %c0_i32, %c0_i32_0 : i32, i32
  }
  func.func @transform_11(%arg0: i32) -> (i32, i32) {
    %c0_i32 = arith.constant 0 : i32
    %c0_i32_0 = arith.constant 0 : i32
    return %c0_i32, %arg0 : i32, i32
  }
}

</mosaic_0001>

<llo_original>
// kernel: subnetwork_forward.1
$region0: #{subnetwork_forward.1}
  #allocation0 [shape = 'u32[]', space=smem, size = 0x4, offset = 0x4, fixed_abs, tag = 'smem constant byte address 0x4 - core index']
  #allocation1 [shape = 'u32[144,128]{1,0:T(1,128)}', space=vmem, size = 0x12000, scoped, tag = 'internal scratch']
  #allocation2 [shape = 'f32[1,1]{1,0:T(1,128)S(1)}', space=vmem, size = 0x200, scoped, tag = 'scoped memory for subnetwork_forward.1']
  %s0 = inlined_call_operand.vmem [shape: f32[1,256], index: 0, kind: input, shape index: {}]
  %s1 = inlined_call_operand.vmem [shape: f32[48,1], index: 1, kind: input, shape index: {}]
  %s2 = inlined_call_operand.vmem [shape: f32[48,1], index: 2, kind: input, shape index: {}]
  %s3 = inlined_call_operand.vmem [shape: bf16[96,48], index: 3, kind: input, shape index: {}]
  %s4 = inlined_call_operand.vmem [shape: f32[96,1], index: 4, kind: input, shape index: {}]
  %s5 = inlined_call_operand.vmem [shape: bf16[96,96], index: 5, kind: input, shape index: {}]
  %s6 = inlined_call_operand.vmem [shape: f32[96,1], index: 6, kind: input, shape index: {}]
  %s7 = inlined_call_operand.vmem [shape: bf16[48,96], index: 7, kind: input, shape index: {}]
  %s8 = inlined_call_operand.vmem [shape: f32[48,1], index: 8, kind: input, shape index: {}]
  %s9 = inlined_call_operand.vmem [shape: f32[48,1], index: 9, kind: input, shape index: {}]
  %s10 = inlined_call_operand.<no memory space> [shape: f32[1,1], index: 10, kind: input, shape index: {}]
  %s11 = inlined_call_operand.vmem [shape: f32[1,256], index: 11, kind: output, shape index: {}]
  %s12 = sld [smem:[#allocation0]]
  $region77: #{subnetwork_forward.1} parent=0
    _
  %s14 = ssub.s32 1, %s12
  %s15 = scalar_select 0, %s14, %s12
  %v16 = vstv %s10
  %17 = vst [vmem:[#allocation2] sm:$0x1] %v16
  loop: start=0, step=1, limit=4
  $region2: #{subnetwork_forward.1} parent=0 // loop_pre_header
    _
  $region3: #{subnetwork_forward.1} parent=0 // loop_header
    %s19 = sphi 0, %s23
    %p20 = scmp.ge.s32.totalorder %s19, 4
    %s29 = sphi 0, %s31
    %s32 = sphi 0, %s29
    %s33 = sphi 0, %s32
    %s49 = sphi 0, %s33
    %s53 = sphi 0, %s53
    %s55 = sphi 0, %s53
    %s56 = sphi 0, %s55
    %s70 = sphi 0, %s56
    %s74 = sphi 0, %s74
    %s76 = sphi 0, %s74
    %s77 = sphi 0, %s76
    %s91 = sphi 0, %s77
    %s95 = sphi 0, %s95
    %s97 = sphi 0, %s95
    %s98 = sphi 0, %s97
    %s112 = sphi 0, %s98
    %s116 = sphi 0, %s116
    %s118 = sphi 0, %s116
    %s119 = sphi 0, %s118
    %s133 = sphi 0, %s119
    %s137 = sphi 0, %s137
    %s139 = sphi 0, %s137
    %s140 = sphi 0, %s139
    %s154 = sphi 0, %s140
    %s158 = sphi 0, %s158
    %s160 = sphi 0, %s158
    %s161 = sphi 0, %s160
    %s175 = sphi 0, %s161
    %s179 = sphi 0, %s179
    %s181 = sphi 0, %s179
    %s182 = sphi 0, %s181
    %s196 = sphi 0, %s182
    %s200 = sphi 0, %s200
    %s202 = sphi 0, %s200
    %s203 = sphi 0, %s202
    %s217 = sphi 0, %s203
    %s221 = sphi 0, %s221
    %s223 = sphi 0, %s221
    %s224 = sphi 0, %s223
    %s238 = sphi 0, %s224
    %s242 = sphi 0, %s242
    %s244 = sphi 0, %s242
    %s245 = sphi 0, %s244
    %s259 = sphi 0, %s245
    %s265 = sphi 0, %s267
    %s268 = sphi 0, %s265
    %s269 = sphi 0, %s268
    %s285 = sphi 0, %s269
  $region4: #{subnetwork_forward.1} parent=0 // loop_header_branch
    %22 = sbr.rel (%p20) target = $region8
  $region5: #{subnetwork_forward.1} parent=0 // loop_body
    %s24 = ssub.s32 %s19, 1
    %s25 = ssub.s32 %s19, 2
    %s26 = sadd.s32 %s19, 1
    %s27 = ssub.s32 %s19, %s26
    %p28 = scmp.eq.s32.totalorder %s27, 0
    %s30 = sadd.s32 %s29, 1
    %s31 = scalar_select %p28, %s29, %s30
    %p34 = pneg %p28
    %p35 = scmp.eq.s32.totalorder %s19, 1
    %p36 = por %p34, %p35
    %p37 = scmp.ne.s32.totalorder %s29, %s32
    %p38 = scmp.eq.s32.totalorder %s19, 0
    %p39 = por %p37, %p38
    %p40 = scmp.ne.s32.totalorder %s29, %s32
    %p41 = scmp.eq.s32.totalorder %s24, 1
    %p42 = por %p40, %p41
    %p43 = scmp.ne.s32.totalorder %s32, %s33
    %p44 = scmp.eq.s32.totalorder %s24, 0
    %p45 = por %p43, %p44
    %p46 = scmp.ne.s32.totalorder %s32, %s33
    %p47 = scmp.eq.s32.totalorder %s25, 1
    %p48 = por %p46, %p47
    %p50 = scmp.ne.s32.totalorder %s33, %s49
    %p51 = scmp.eq.s32.totalorder %s25, 0
    %p52 = por %p50, %p51
    %s54 = sadd.s32 %s53, 1
    %p57 = scmp.eq.s32.totalorder %s19, 1
    %p58 = scmp.ne.s32.totalorder %s53, %s55
    %p59 = scmp.eq.s32.totalorder %s19, 0
    %p60 = por %p58, %p59
    %p61 = scmp.ne.s32.totalorder %s53, %s55
    %p62 = scmp.eq.s32.totalorder %s24, 1
    %p63 = por %p61, %p62
    %p64 = scmp.ne.s32.totalorder %s55, %s56
    %p65 = scmp.eq.s32.totalorder %s24, 0
    %p66 = por %p64, %p65
    %p67 = scmp.ne.s32.totalorder %s55, %s56
    %p68 = scmp.eq.s32.totalorder %s25, 1
    %p69 = por %p67, %p68
    %p71 = scmp.ne.s32.totalorder %s56, %s70
    %p72 = scmp.eq.s32.totalorder %s25, 0
    %p73 = por %p71, %p72
    %s75 = sadd.s32 %s74, 1
    %p78 = scmp.eq.s32.totalorder %s19, 1
    %p79 = scmp.ne.s32.totalorder %s74, %s76
    %p80 = scmp.eq.s32.totalorder %s19, 0
    %p81 = por %p79, %p80
    %p82 = scmp.ne.s32.totalorder %s74, %s76
    %p83 = scmp.eq.s32.totalorder %s24, 1
    %p84 = por %p82, %p83
    %p85 = scmp.ne.s32.totalorder %s76, %s77
    %p86 = scmp.eq.s32.totalorder %s24, 0
    %p87 = por %p85, %p86
    %p88 = scmp.ne.s32.totalorder %s76, %s77
    %p89 = scmp.eq.s32.totalorder %s25, 1
    %p90 = por %p88, %p89
    %p92 = scmp.ne.s32.totalorder %s77, %s91
    %p93 = scmp.eq.s32.totalorder %s25, 0
    %p94 = por %p92, %p93
    %s96 = sadd.s32 %s95, 1
    %p99 = scmp.eq.s32.totalorder %s19, 1
    %p100 = scmp.ne.s32.totalorder %s95, %s97
    %p101 = scmp.eq.s32.totalorder %s19, 0
    %p102 = por %p100, %p101
    %p103 = scmp.ne.s32.totalorder %s95, %s97
    %p104 = scmp.eq.s32.totalorder %s24, 1
    %p105 = por %p103, %p104
    %p106 = scmp.ne.s32.totalorder %s97, %s98
    %p107 = scmp.eq.s32.totalorder %s24, 0
    %p108 = por %p106, %p107
    %p109 = scmp.ne.s32.totalorder %s97, %s98
    %p110 = scmp.eq.s32.totalorder %s25, 1
    %p111 = por %p109, %p110
    %p113 = scmp.ne.s32.totalorder %s98, %s112
    %p114 = scmp.eq.s32.totalorder %s25, 0
    %p115 = por %p113, %p114
    %s117 = sadd.s32 %s116, 1
    %p120 = scmp.eq.s32.totalorder %s19, 1
    %p121 = scmp.ne.s32.totalorder %s116, %s118
    %p122 = scmp.eq.s32.totalorder %s19, 0
    %p123 = por %p121, %p122
    %p124 = scmp.ne.s32.totalorder %s116, %s118
    %p125 = scmp.eq.s32.totalorder %s24, 1
    %p126 = por %p124, %p125
    %p127 = scmp.ne.s32.totalorder %s118, %s119
    %p128 = scmp.eq.s32.totalorder %s24, 0
    %p129 = por %p127, %p128
    %p130 = scmp.ne.s32.totalorder %s118, %s119
    %p131 = scmp.eq.s32.totalorder %s25, 1
    %p132 = por %p130, %p131
    %p134 = scmp.ne.s32.totalorder %s119, %s133
    %p135 = scmp.eq.s32.totalorder %s25, 0
    %p136 = por %p134, %p135
    %s138 = sadd.s32 %s137, 1
    %p141 = scmp.eq.s32.totalorder %s19, 1
    %p142 = scmp.ne.s32.totalorder %s137, %s139
    %p143 = scmp.eq.s32.totalorder %s19, 0
    %p144 = por %p142, %p143
    %p145 = scmp.ne.s32.totalorder %s137, %s139
    %p146 = scmp.eq.s32.totalorder %s24, 1
    %p147 = por %p145, %p146
    %p148 = scmp.ne.s32.totalorder %s139, %s140
    %p149 = scmp.eq.s32.totalorder %s24, 0
    %p150 = por %p148, %p149
    %p151 = scmp.ne.s32.totalorder %s139, %s140
    %p152 = scmp.eq.s32.totalorder %s25, 1
    %p153 = por %p151, %p152
    %p155 = scmp.ne.s32.totalorder %s140, %s154
    %p156 = scmp.eq.s32.totalorder %s25, 0
    %p157 = por %p155, %p156
    %s159 = sadd.s32 %s158, 1
    %p162 = scmp.eq.s32.totalorder %s19, 1
    %p163 = scmp.ne.s32.totalorder %s158, %s160
    %p164 = scmp.eq.s32.totalorder %s19, 0
    %p165 = por %p163, %p164
    %p166 = scmp.ne.s32.totalorder %s158, %s160
    %p167 = scmp.eq.s32.totalorder %s24, 1
    %p168 = por %p166, %p167
    %p169 = scmp.ne.s32.totalorder %s160, %s161
    %p170 = scmp.eq.s32.totalorder %s24, 0
    %p171 = por %p169, %p170
    %p172 = scmp.ne.s32.totalorder %s160, %s161
    %p173 = scmp.eq.s32.totalorder %s25, 1
    %p174 = por %p172, %p173
    %p176 = scmp.ne.s32.totalorder %s161, %s175
    %p177 = scmp.eq.s32.totalorder %s25, 0
    %p178 = por %p176, %p177
    %s180 = sadd.s32 %s179, 1
    %p183 = scmp.eq.s32.totalorder %s19, 1
    %p184 = scmp.ne.s32.totalorder %s179, %s181
    %p185 = scmp.eq.s32.totalorder %s19, 0
    %p186 = por %p184, %p185
    %p187 = scmp.ne.s32.totalorder %s179, %s181
    %p188 = scmp.eq.s32.totalorder %s24, 1
    %p189 = por %p187, %p188
    %p190 = scmp.ne.s32.totalorder %s181, %s182
    %p191 = scmp.eq.s32.totalorder %s24, 0
    %p192 = por %p190, %p191
    %p193 = scmp.ne.s32.totalorder %s181, %s182
    %p194 = scmp.eq.s32.totalorder %s25, 1
    %p195 = por %p193, %p194
    %p197 = scmp.ne.s32.totalorder %s182, %s196
    %p198 = scmp.eq.s32.totalorder %s25, 0
    %p199 = por %p197, %p198
    %s201 = sadd.s32 %s200, 1
    %p204 = scmp.eq.s32.totalorder %s19, 1
    %p205 = scmp.ne.s32.totalorder %s200, %s202
    %p206 = scmp.eq.s32.totalorder %s19, 0
    %p207 = por %p205, %p206
    %p208 = scmp.ne.s32.totalorder %s200, %s202
    %p209 = scmp.eq.s32.totalorder %s24, 1
    %p210 = por %p208, %p209
    %p211 = scmp.ne.s32.totalorder %s202, %s203
    %p212 = scmp.eq.s32.totalorder %s24, 0
    %p213 = por %p211, %p212
    %p214 = scmp.ne.s32.totalorder %s202, %s203
    %p215 = scmp.eq.s32.totalorder %s25, 1
    %p216 = por %p214, %p215
    %p218 = scmp.ne.s32.totalorder %s203, %s217
    %p219 = scmp.eq.s32.totalorder %s25, 0
    %p220 = por %p218, %p219
    %s222 = sadd.s32 %s221, 1
    %p225 = scmp.eq.s32.totalorder %s19, 1
    %p226 = scmp.ne.s32.totalorder %s221, %s223
    %p227 = scmp.eq.s32.totalorder %s19, 0
    %p228 = por %p226, %p227
    %p229 = scmp.ne.s32.totalorder %s221, %s223
    %p230 = scmp.eq.s32.totalorder %s24, 1
    %p231 = por %p229, %p230
    %p232 = scmp.ne.s32.totalorder %s223, %s224
    %p233 = scmp.eq.s32.totalorder %s24, 0
    %p234 = por %p232, %p233
    %p235 = scmp.ne.s32.totalorder %s223, %s224
    %p236 = scmp.eq.s32.totalorder %s25, 1
    %p237 = por %p235, %p236
    %p239 = scmp.ne.s32.totalorder %s224, %s238
    %p240 = scmp.eq.s32.totalorder %s25, 0
    %p241 = por %p239, %p240
    %s243 = sadd.s32 %s242, 1
    %p246 = scmp.eq.s32.totalorder %s19, 1
    %p247 = scmp.ne.s32.totalorder %s242, %s244
    %p248 = scmp.eq.s32.totalorder %s19, 0
    %p249 = por %p247, %p248
    %p250 = scmp.ne.s32.totalorder %s242, %s244
    %p251 = scmp.eq.s32.totalorder %s24, 1
    %p252 = por %p250, %p251
    %p253 = scmp.ne.s32.totalorder %s244, %s245
    %p254 = scmp.eq.s32.totalorder %s24, 0
    %p255 = por %p253, %p254
    %p256 = scmp.ne.s32.totalorder %s244, %s245
    %p257 = scmp.eq.s32.totalorder %s25, 1
    %p258 = por %p256, %p257
    %p260 = scmp.ne.s32.totalorder %s245, %s259
    %p261 = scmp.eq.s32.totalorder %s25, 0
    %p262 = por %p260, %p261
    %s263 = ssub.s32 %s19, %s26
    %p264 = scmp.eq.s32.totalorder %s263, 0
    %s266 = sadd.s32 %s265, 1
    %s267 = scalar_select %p264, %s265, %s266
    %p270 = pneg %p264
    %p271 = scmp.eq.s32.totalorder %s19, 1
    %p272 = por %p270, %p271
    %p273 = scmp.ne.s32.totalorder %s265, %s268
    %p274 = scmp.eq.s32.totalorder %s19, 0
    %p275 = por %p273, %p274
    %p276 = scmp.ne.s32.totalorder %s265, %s268
    %p277 = scmp.eq.s32.totalorder %s24, 1
    %p278 = por %p276, %p277
    %p279 = scmp.ne.s32.totalorder %s268, %s269
    %p280 = scmp.eq.s32.totalorder %s24, 0
    %p281 = por %p279, %p280
    %p282 = scmp.ne.s32.totalorder %s268, %s269
    %p283 = scmp.eq.s32.totalorder %s25, 1
    %p284 = por %p282, %p283
    %p286 = scmp.ne.s32.totalorder %s269, %s285
    %p287 = scmp.eq.s32.totalorder %s25, 0
    %p288 = por %p286, %p287
    %p289 = scmp.le.s32.totalorder 1, %s19
    %p290 = scmp.lt.s32.totalorder %s19, 3
    %p291 = pnand %p289, %p290
    %p292 = pneg %p291
    // Predicated region
    $region9: #{subnetwork_forward.1} parent=5 // pred_check
      _
    $region10: #{subnetwork_forward.1} parent=5 // pred_check_branch
      %294 = sbr.rel (%p291) target = $region12
    $region11: #{subnetwork_forward.1} parent=5 // pred_region
      %s295 = ssub.s32 %s19, 1
      // Predicated region
      $region13: #{subnetwork_forward.1} parent=11 // pred_check
        %p296 = pneg %p66
      $region14: #{subnetwork_forward.1} parent=11 // pred_check_branch
        %298 = sbr.rel (%p296) target = $region16
      $region15: #{subnetwork_forward.1} parent=11 // pred_region
        _
      $region16: #{subnetwork_forward.1} parent=11 // pred_fallthru
        _
      // Predicated region
      $region17: #{subnetwork_forward.1} parent=11 // pred_check
        %p299 = pneg %p87
      $region18: #{subnetwork_forward.1} parent=11 // pred_check_branch
        %301 = sbr.rel (%p299) target = $region20
      $region19: #{subnetwork_forward.1} parent=11 // pred_region
        _
      $region20: #{subnetwork_forward.1} parent=11 // pred_fallthru
        _
      // Predicated region
      $region21: #{subnetwork_forward.1} parent=11 // pred_check
        %p302 = pneg %p108
      $region22: #{subnetwork_forward.1} parent=11 // pred_check_branch
        %304 = sbr.rel (%p302) target = $region24
      $region23: #{subnetwork_forward.1} parent=11 // pred_region
        _
      $region24: #{subnetwork_forward.1} parent=11 // pred_fallthru
        _
      // Predicated region
      $region25: #{subnetwork_forward.1} parent=11 // pred_check
        %p305 = pneg %p129
      $region26: #{subnetwork_forward.1} parent=11 // pred_check_branch
        %307 = sbr.rel (%p305) target = $region28
      $region27: #{subnetwork_forward.1} parent=11 // pred_region
        _
      $region28: #{subnetwork_forward.1} parent=11 // pred_fallthru
        _
      // Predicated region
      $region29: #{subnetwork_forward.1} parent=11 // pred_check
        %p308 = pneg %p150
      $region30: #{subnetwork_forward.1} parent=11 // pred_check_branch
        %310 = sbr.rel (%p308) target = $region32
      $region31: #{subnetwork_forward.1} parent=11 // pred_region
        _
      $region32: #{subnetwork_forward.1} parent=11 // pred_fallthru
        _
      // Predicated region
      $region33: #{subnetwork_forward.1} parent=11 // pred_check
        %p311 = pneg %p171
      $region34: #{subnetwork_forward.1} parent=11 // pred_check_branch
        %313 = sbr.rel (%p311) target = $region36
      $region35: #{subnetwork_forward.1} parent=11 // pred_region
        _
      $region36: #{subnetwork_forward.1} parent=11 // pred_fallthru
        _
      // Predicated region
      $region37: #{subnetwork_forward.1} parent=11 // pred_check
        %p314 = pneg %p192
      $region38: #{subnetwork_forward.1} parent=11 // pred_check_branch
        %316 = sbr.rel (%p314) target = $region40
      $region39: #{subnetwork_forward.1} parent=11 // pred_region
        _
      $region40: #{subnetwork_forward.1} parent=11 // pred_fallthru
        _
      // Predicated region
      $region41: #{subnetwork_forward.1} parent=11 // pred_check
        %p317 = pneg %p213
      $region42: #{subnetwork_forward.1} parent=11 // pred_check_branch
        %319 = sbr.rel (%p317) target = $region44
      $region43: #{subnetwork_forward.1} parent=11 // pred_region
        _
      $region44: #{subnetwork_forward.1} parent=11 // pred_fallthru
        _
      // Predicated region
      $region45: #{subnetwork_forward.1} parent=11 // pred_check
        %p320 = pneg %p234
      $region46: #{subnetwork_forward.1} parent=11 // pred_check_branch
        %322 = sbr.rel (%p320) target = $region48
      $region47: #{subnetwork_forward.1} parent=11 // pred_region
        _
      $region48: #{subnetwork_forward.1} parent=11 // pred_fallthru
        _
      // Predicated region
      $region49: #{subnetwork_forward.1} parent=11 // pred_check
        %p323 = pneg %p255
      $region50: #{subnetwork_forward.1} parent=11 // pred_check_branch
        %325 = sbr.rel (%p323) target = $region52
      $region51: #{subnetwork_forward.1} parent=11 // pred_region
        _
      $region52: #{subnetwork_forward.1} parent=11 // pred_fallthru
        _
    $region12: #{subnetwork_forward.1} parent=5 // pred_fallthru
      _
    %p326 = scmp.lt.s32.totalorder %s19, 2
    // Predicated region
    $region53: #{subnetwork_forward.1} parent=5 // pred_check
      %p327 = pneg %p326
    $region54: #{subnetwork_forward.1} parent=5 // pred_check_branch
      %329 = sbr.rel (%p327) target = $region56
    $region55: #{subnetwork_forward.1} parent=5 // pred_region
      // Predicated region
      $region57: #{subnetwork_forward.1} parent=55 // pred_check
        %p330 = pneg %p39
      $region58: #{subnetwork_forward.1} parent=55 // pred_check_branch
        %332 = sbr.rel (%p330) target = $region60
      $region59: #{subnetwork_forward.1} parent=55 // pred_region
        %p333 = scmp.lt.s32.totalorder %s19, 1
        %s334 = scalar_select %p333, %s19, 1
        %s335 = scalar_lea.vmem %s0, %s334
      $region60: #{subnetwork_forward.1} parent=55 // pred_fallthru
        _
    $region56: #{subnetwork_forward.1} parent=5 // pred_fallthru
      _
    %p336 = scmp.le.s32.totalorder 1, %s19
    %p337 = scmp.lt.s32.totalorder %s19, 3
    %p338 = pnand %p336, %p337
    %p339 = pneg %p338
    // Predicated region
    $region61: #{subnetwork_forward.1} parent=5 // pred_check
      _
    $region62: #{subnetwork_forward.1} parent=5 // pred_check_branch
      %341 = sbr.rel (%p338) target = $region64
    $region63: #{subnetwork_forward.1} parent=5 // pred_region
      %s342 = ssub.s32 %s19, 1
      %p343 = scmp.lt.s32.totalorder %s24, 1
      %s344 = scalar_select %p343, %s24, 1
      %s345 = scalar_lea.vmem %s0, %s344
      %p346 = pneg %p45
      %p347 = pneg %p42
      %p348 = pneg %p66
      %p349 = pneg %p63
      %p350 = pneg %p87
      %p351 = pneg %p84
      %p352 = pneg %p108
      %p353 = pneg %p105
      %p354 = pneg %p129
      %p355 = pneg %p126
      %p356 = pneg %p150
      %p357 = pneg %p147
      %p358 = pneg %p171
      %p359 = pneg %p168
      %p360 = pneg %p192
      %p361 = pneg %p189
      %p362 = pneg %p213
      %p363 = pneg %p210
      %p364 = pneg %p234
      %p365 = pneg %p231
      %p366 = pneg %p255
      %p367 = pneg %p252
      %p368 = pneg %p281
      %p369 = pneg %p278
      %p370 = scmp.lt.s32.totalorder %s24, 1
      %s371 = scalar_select %p370, %s24, 1
      %s372 = scalar_lea.vmem %s11, %s371
      %p373 = scmp.lt.s32.totalorder %s24, 1
      %s374 = scalar_select %p373, %s24, 1
      %s375 = scalar_lea.vmem %s0, %s374
      %p376 = scmp.lt.s32.totalorder %s24, 1
      %s377 = scalar_select %p376, %s24, 1
      %s378 = scalar_lea.vmem %s11, %s377
      %v380 = vld [vmem:[%s375] sm:$0x1]
      %v381 = vld [vmem:[%s1] sm:$0xff]
      %v382 = vld [vmem:[%s1 + $0x8] sm:$0xff]
      %v383 = vld [vmem:[%s1 + $0x10] sm:$0xff]
      %v384 = vld [vmem:[%s1 + $0x18] sm:$0xff]
      %v385 = vld [vmem:[%s1 + $0x20] sm:$0xff]
      %v386 = vld [vmem:[%s1 + $0x28] sm:$0xff]
      %388 = vset.pattern.permute.xlu0 0
      %389 = vperm.xlu0 %388, %v381
      %v390 = vpop.permute.xlu0 %389
      %393 = vset.pattern.permute.xlu0 0
      %394 = vperm.xlu0 %393, %v382
      %v395 = vpop.permute.xlu0 %394
      %398 = vset.pattern.permute.xlu0 0
      %399 = vperm.xlu0 %398, %v383
      %v400 = vpop.permute.xlu0 %399
      %403 = vset.pattern.permute.xlu0 0
      %404 = vperm.xlu0 %403, %v384
      %v405 = vpop.permute.xlu0 %404
      %408 = vset.pattern.permute.xlu0 0
      %409 = vperm.xlu0 %408, %v385
      %v410 = vpop.permute.xlu0 %409
      %413 = vset.pattern.permute.xlu0 0
      %414 = vperm.xlu0 %413, %v386
      %v415 = vpop.permute.xlu0 %414
      %v418 = vlaneseq
      %v419 = vshrl.u32 %v418, 7
      %v420 = vsub.s32 0, %v419
      %v421 = vrot.slane %v380, %v420
      %v423 = vmul.f32 %v390, %v421
      %v424 = vmul.f32 %v395, %v421
      %v425 = vmul.f32 %v400, %v421
      %v426 = vmul.f32 %v405, %v421
      %v427 = vmul.f32 %v410, %v421
      %v428 = vmul.f32 %v415, %v421
      %v429 = vld [vmem:[%s2] sm:$0xff]
      %v430 = vld [vmem:[%s2 + $0x8] sm:$0xff]
      %v431 = vld [vmem:[%s2 + $0x10] sm:$0xff]
      %v432 = vld [vmem:[%s2 + $0x18] sm:$0xff]
      %v433 = vld [vmem:[%s2 + $0x20] sm:$0xff]
      %v434 = vld [vmem:[%s2 + $0x28] sm:$0xff]
      %436 = vset.pattern.permute.xlu0 0
      %437 = vperm.xlu0 %436, %v429
      %v438 = vpop.permute.xlu0 %437
      %441 = vset.pattern.permute.xlu0 0
      %442 = vperm.xlu0 %441, %v430
      %v443 = vpop.permute.xlu0 %442
      %446 = vset.pattern.permute.xlu0 0
      %447 = vperm.xlu0 %446, %v431
      %v448 = vpop.permute.xlu0 %447
      %451 = vset.pattern.permute.xlu0 0
      %452 = vperm.xlu0 %451, %v432
      %v453 = vpop.permute.xlu0 %452
      %456 = vset.pattern.permute.xlu0 0
      %457 = vperm.xlu0 %456, %v433
      %v458 = vpop.permute.xlu0 %457
      %461 = vset.pattern.permute.xlu0 0
      %462 = vperm.xlu0 %461, %v434
      %v463 = vpop.permute.xlu0 %462
      %v465 = vadd.f32 %v423, %v438
      %v466 = vadd.f32 %v424, %v443
      %v467 = vadd.f32 %v425, %v448
      %v468 = vadd.f32 %v426, %v453
      %v469 = vadd.f32 %v427, %v458
      %v470 = vadd.f32 %v428, %v463
      %v471 = vmul.f32 %v465, 0.1
      %v472 = vmul.f32 %v466, 0.1
      %v473 = vmul.f32 %v467, 0.1
      %v474 = vmul.f32 %v468, 0.1
      %v475 = vmul.f32 %v469, 0.1
      %v476 = vmul.f32 %v470, 0.1
      %v477 = vmax.f32 %v465, %v471
      %v478 = vmax.f32 %v466, %v472
      %v479 = vmax.f32 %v467, %v473
      %v480 = vmax.f32 %v468, %v474
      %v481 = vmax.f32 %v469, %v475
      %v482 = vmax.f32 %v470, %v476
      %v483 = vld [vmem:[%s3] sm:$0xf]
      %v484 = vld [vmem:[%s3 + $0x4] sm:$0xf]
      %v485 = vld [vmem:[%s3 + $0x8] sm:$0xf]
      %v486 = vld [vmem:[%s3 + $0xc] sm:$0xf]
      %v487 = vld [vmem:[%s3 + $0x10] sm:$0xf]
      %v488 = vld [vmem:[%s3 + $0x14] sm:$0xf]
      %v489 = vld [vmem:[%s3 + $0x18] sm:$0xf]
      %v490 = vld [vmem:[%s3 + $0x1c] sm:$0xf]
      %v491 = vld [vmem:[%s3 + $0x20] sm:$0xf]
      %v492 = vld [vmem:[%s3 + $0x24] sm:$0xf]
      %v493 = vld [vmem:[%s3 + $0x28] sm:$0xf]
      %v494 = vld [vmem:[%s3 + $0x2c] sm:$0xf]
      %v495 = vpack.c.bf16 %v478, %v477
      %v496 = vpack.c.bf16 %v480, %v479
      %v497 = vpack.c.bf16 %v482, %v481
      %v498 = vld [vmem:[%s4] sm:$0xff]
      %v499 = vld [vmem:[%s4 + $0x8] sm:$0xff]
      %v500 = vld [vmem:[%s4 + $0x10] sm:$0xff]
      %v501 = vld [vmem:[%s4 + $0x18] sm:$0xff]
      %v502 = vld [vmem:[%s4 + $0x20] sm:$0xff]
      %v503 = vld [vmem:[%s4 + $0x28] sm:$0xff]
      %v504 = vld [vmem:[%s4 + $0x30] sm:$0xff]
      %v505 = vld [vmem:[%s4 + $0x38] sm:$0xff]
      %v506 = vld [vmem:[%s4 + $0x40] sm:$0xff]
      %v507 = vld [vmem:[%s4 + $0x48] sm:$0xff]
      %v508 = vld [vmem:[%s4 + $0x50] sm:$0xff]
      %v509 = vld [vmem:[%s4 + $0x58] sm:$0xff]
      %511 = vset.pattern.permute.xlu0 0
      %512 = vperm.xlu0 %511, %v498
      %v513 = vpop.permute.xlu0 %512
      %516 = vset.pattern.permute.xlu0 0
      %517 = vperm.xlu0 %516, %v499
      %v518 = vpop.permute.xlu0 %517
      %521 = vset.pattern.permute.xlu0 0
      %522 = vperm.xlu0 %521, %v500
      %v523 = vpop.permute.xlu0 %522
      %526 = vset.pattern.permute.xlu0 0
      %527 = vperm.xlu0 %526, %v501
      %v528 = vpop.permute.xlu0 %527
      %531 = vset.pattern.permute.xlu0 0
      %532 = vperm.xlu0 %531, %v502
      %v533 = vpop.permute.xlu0 %532
      %536 = vset.pattern.permute.xlu0 0
      %537 = vperm.xlu0 %536, %v503
      %v538 = vpop.permute.xlu0 %537
      %541 = vset.pattern.permute.xlu0 0
      %542 = vperm.xlu0 %541, %v504
      %v543 = vpop.permute.xlu0 %542
      %546 = vset.pattern.permute.xlu0 0
      %547 = vperm.xlu0 %546, %v505
      %v548 = vpop.permute.xlu0 %547
      %551 = vset.pattern.permute.xlu0 0
      %552 = vperm.xlu0 %551, %v506
      %v553 = vpop.permute.xlu0 %552
      %556 = vset.pattern.permute.xlu0 0
      %557 = vperm.xlu0 %556, %v507
      %v558 = vpop.permute.xlu0 %557
      %561 = vset.pattern.permute.xlu0 0
      %562 = vperm.xlu0 %561, %v508
      %v563 = vpop.permute.xlu0 %562
      %566 = vset.pattern.permute.xlu0 0
      %567 = vperm.xlu0 %566, %v509
      %v568 = vpop.permute.xlu0 %567
      %v582 = vunpack.c.l.b16 %v483
      %v583 = vunpack.c.l.b16 %v484
      %v584 = vunpack.c.l.b16 %v485
      %v585 = vunpack.c.l.b16 %v486
      %v586 = vunpack.c.l.b16 %v487
      %v587 = vunpack.c.l.b16 %v488
      %v588 = vunpack.c.l.b16 %v489
      %v589 = vunpack.c.l.b16 %v490
      %v590 = vunpack.c.l.b16 %v491
      %v591 = vunpack.c.l.b16 %v492
      %v592 = vunpack.c.l.b16 %v493
      %v593 = vunpack.c.l.b16 %v494
      %v594 = vpack.c.b16 %v583, %v582
      %v595 = vpack.c.b16 %v585, %v584
      %v596 = vpack.c.b16 %v587, %v586
      %v597 = vpack.c.b16 %v589, %v588
      %v598 = vpack.c.b16 %v591, %v590
      %v599 = vpack.c.b16 %v593, %v592
      %vm600 = vcmask 392192
      %v602 = vsel %vm600, %v594, 0
      %v605 = vsel %vm600, %v595, 0
      %v608 = vsel %vm600, %v596, 0
      %v611 = vsel %vm600, %v597, 0
      %v614 = vsel %vm600, %v598, 0
      %v617 = vsel %vm600, %v599, 0
      %619 = vmatprep.subr.bf16.mxu0 0
      %620 = vmatpush1.bf16.msra.mxu0 %v495
      %621 = vmatprep.subr.bf16.mxu0 0
      %622 = vmatpush1.bf16.msra.mxu0 %v496
      %623 = vmatprep.subr.bf16.mxu0 0
      %624 = vmatpush1.bf16.msra.mxu0 %v497
      %625 = vmatprep.subr.bf16.mxu0 0
      %626 = vmatpush1.bf16.msra.mxu0 0
      %627 = vmatprep.subr.bf16.mxu0 0
      %628 = vmatpush1.bf16.msra.mxu0 0
      %629 = vmatprep.subr.bf16.mxu0 0
      %630 = vmatpush1.bf16.msra.mxu0 0
      %631 = vmatprep.subr.bf16.mxu0 0
      %632 = vmatpush1.bf16.msra.mxu0 0
      %633 = vmatprep.subr.bf16.mxu0 0
      %634 = vmatpush1.bf16.msra.mxu0 0
      %635 = vmatprep.subr.bf16.mxu0 0
      %636 = vmatpush1.bf16.msra.mxu0 0
      %637 = vmatprep.subr.bf16.mxu0 0
      %638 = vmatpush1.bf16.msra.mxu0 0
      %639 = vmatprep.subr.bf16.mxu0 0
      %640 = vmatpush1.bf16.msra.mxu0 0
      %641 = vmatprep.subr.bf16.mxu0 0
      %642 = vmatpush1.bf16.msra.mxu0 0
      %643 = vmatprep.subr.bf16.mxu0 0
      %644 = vmatpush1.bf16.msra.mxu0 0
      %645 = vmatprep.subr.bf16.mxu0 0
      %646 = vmatpush1.bf16.msra.mxu0 0
      %647 = vmatprep.subr.bf16.mxu0 0
      %648 = vmatpush1.bf16.msra.mxu0 0
      %649 = vmatprep.subr.bf16.mxu0 0
      %650 = vmatpush1.bf16.msra.mxu0 0
      %651 = vmatprep.mubr.bf16.mxu0 0
      %652 = vmatmul.mubr.bf16.gmra.mrb[0].mxu0 %v602
      %v653 = vpop.f32.mrb[0].mxu0
      %v654 = vadd.f32 %v513, %v653
      %v655 = vpop.f32.mrb[0].mxu0
      %v656 = vpop.f32.mrb[0].mxu0
      %v657 = vadd.f32 %v518, %v656
      %v658 = vpop.f32.mrb[0].mxu0
      %659 = vmatprep.mubr.bf16.mxu0 0
      %660 = vmatmul.mubr.bf16.gmra.mrb[0].mxu0 %v605
      %v661 = vpop.f32.mrb[0].mxu0
      %v662 = vadd.f32 %v523, %v661
      %v663 = vpop.f32.mrb[0].mxu0
      %v664 = vpop.f32.mrb[0].mxu0
      %v665 = vadd.f32 %v528, %v664
      %v666 = vpop.f32.mrb[0].mxu0
      %667 = vmatprep.mubr.bf16.mxu0 0
      %668 = vmatmul.mubr.bf16.gmra.mrb[0].mxu0 %v608
      %v669 = vpop.f32.mrb[0].mxu0
      %v670 = vadd.f32 %v533, %v669
      %v671 = vpop.f32.mrb[0].mxu0
      %v672 = vpop.f32.mrb[0].mxu0
      %v673 = vadd.f32 %v538, %v672
      %v674 = vpop.f32.mrb[0].mxu0
      %675 = vmatprep.mubr.bf16.mxu0 0
      %676 = vmatmul.mubr.bf16.gmra.mrb[0].mxu0 %v611
      %v677 = vpop.f32.mrb[0].mxu0
      %v678 = vadd.f32 %v543, %v677
      %v679 = vpop.f32.mrb[0].mxu0
      %v680 = vpop.f32.mrb[0].mxu0
      %v681 = vadd.f32 %v548, %v680
      %v682 = vpop.f32.mrb[0].mxu0
      %683 = vmatprep.mubr.bf16.mxu0 0
      %684 = vmatmul.mubr.bf16.gmra.mrb[0].mxu0 %v614
      %v685 = vpop.f32.mrb[0].mxu0
      %v686 = vadd.f32 %v553, %v685
      %v687 = vpop.f32.mrb[0].mxu0
      %v688 = vpop.f32.mrb[0].mxu0
      %v689 = vadd.f32 %v558, %v688
      %v690 = vpop.f32.mrb[0].mxu0
      %691 = vmatprep.mubr.bf16.mxu0 0
      %692 = vmatmul.mubr.bf16.gmra.mrb[0].mxu0 %v617
      %v693 = vpop.f32.mrb[0].mxu0
      %v694 = vadd.f32 %v563, %v693
      %v695 = vpop.f32.mrb[0].mxu0
      %v696 = vpop.f32.mrb[0].mxu0
      %v697 = vadd.f32 %v568, %v696
      %v698 = vpop.f32.mrb[0].mxu0
      %699 = vdwg.mxu0
      %v700 = vmul.f32 %v654, 0.1
      %v701 = vmul.f32 %v657, 0.1
      %v702 = vmul.f32 %v662, 0.1
      %v703 = vmul.f32 %v665, 0.1
      %v704 = vmul.f32 %v670, 0.1
      %v705 = vmul.f32 %v673, 0.1
      %v706 = vmul.f32 %v678, 0.1
      %v707 = vmul.f32 %v681, 0.1
      %v708 = vmul.f32 %v686, 0.1
      %v709 = vmul.f32 %v689, 0.1
      %v710 = vmul.f32 %v694, 0.1
      %v711 = vmul.f32 %v697, 0.1
      %v712 = vmax.f32 %v654, %v700
      %v713 = vmax.f32 %v657, %v701
      %v714 = vmax.f32 %v662, %v702
      %v715 = vmax.f32 %v665, %v703
      %v716 = vmax.f32 %v670, %v704
      %v717 = vmax.f32 %v673, %v705
      %v718 = vmax.f32 %v678, %v706
      %v719 = vmax.f32 %v681, %v707
      %v720 = vmax.f32 %v686, %v708
      %v721 = vmax.f32 %v689, %v709
      %v722 = vmax.f32 %v694, %v710
      %v723 = vmax.f32 %v697, %v711
      %v724 = vld [vmem:[%s5] sm:$0xf]
      %v725 = vld [vmem:[%s5 + $0x4] sm:$0xf]
      %v726 = vld [vmem:[%s5 + $0x8] sm:$0xf]
      %v727 = vld [vmem:[%s5 + $0xc] sm:$0xf]
      %v728 = vld [vmem:[%s5 + $0x10] sm:$0xf]
      %v729 = vld [vmem:[%s5 + $0x14] sm:$0xf]
      %v730 = vld [vmem:[%s5 + $0x18] sm:$0xf]
      %v731 = vld [vmem:[%s5 + $0x1c] sm:$0xf]
      %v732 = vld [vmem:[%s5 + $0x20] sm:$0xf]
      %v733 = vld [vmem:[%s5 + $0x24] sm:$0xf]
      %v734 = vld [vmem:[%s5 + $0x28] sm:$0xf]
      %v735 = vld [vmem:[%s5 + $0x2c] sm:$0xf]
      %v736 = vpack.c.bf16 %v713, %v712
      %v737 = vpack.c.bf16 %v715, %v714
      %v738 = vpack.c.bf16 %v717, %v716
      %v739 = vpack.c.bf16 %v719, %v718
      %v740 = vpack.c.bf16 %v721, %v720
      %v741 = vpack.c.bf16 %v723, %v722
      %v742 = vld [vmem:[%s6] sm:$0xff]
      %v743 = vld [vmem:[%s6 + $0x8] sm:$0xff]
      %v744 = vld [vmem:[%s6 + $0x10] sm:$0xff]
      %v745 = vld [vmem:[%s6 + $0x18] sm:$0xff]
      %v746 = vld [vmem:[%s6 + $0x20] sm:$0xff]
      %v747 = vld [vmem:[%s6 + $0x28] sm:$0xff]
      %v748 = vld [vmem:[%s6 + $0x30] sm:$0xff]
      %v749 = vld [vmem:[%s6 + $0x38] sm:$0xff]
      %v750 = vld [vmem:[%s6 + $0x40] sm:$0xff]
      %v751 = vld [vmem:[%s6 + $0x48] sm:$0xff]
      %v752 = vld [vmem:[%s6 + $0x50] sm:$0xff]
      %v753 = vld [vmem:[%s6 + $0x58] sm:$0xff]
      %755 = vset.pattern.permute.xlu0 0
      %756 = vperm.xlu0 %755, %v742
      %v757 = vpop.permute.xlu0 %756
      %760 = vset.pattern.permute.xlu0 0
      %761 = vperm.xlu0 %760, %v743
      %v762 = vpop.permute.xlu0 %761
      %765 = vset.pattern.permute.xlu0 0
      %766 = vperm.xlu0 %765, %v744
      %v767 = vpop.permute.xlu0 %766
      %770 = vset.pattern.permute.xlu0 0
      %771 = vperm.xlu0 %770, %v745
      %v772 = vpop.permute.xlu0 %771
      %775 = vset.pattern.permute.xlu0 0
      %776 = vperm.xlu0 %775, %v746
      %v777 = vpop.permute.xlu0 %776
      %780 = vset.pattern.permute.xlu0 0
      %781 = vperm.xlu0 %780, %v747
      %v782 = vpop.permute.xlu0 %781
      %785 = vset.pattern.permute.xlu0 0
      %786 = vperm.xlu0 %785, %v748
      %v787 = vpop.permute.xlu0 %786
      %790 = vset.pattern.permute.xlu0 0
      %791 = vperm.xlu0 %790, %v749
      %v792 = vpop.permute.xlu0 %791
      %795 = vset.pattern.permute.xlu0 0
      %796 = vperm.xlu0 %795, %v750
      %v797 = vpop.permute.xlu0 %796
      %800 = vset.pattern.permute.xlu0 0
      %801 = vperm.xlu0 %800, %v751
      %v802 = vpop.permute.xlu0 %801
      %805 = vset.pattern.permute.xlu0 0
      %806 = vperm.xlu0 %805, %v752
      %v807 = vpop.permute.xlu0 %806
      %810 = vset.pattern.permute.xlu0 0
      %811 = vperm.xlu0 %810, %v753
      %v812 = vpop.permute.xlu0 %811
      %v826 = vunpack.c.l.b16 %v724
      %v827 = vunpack.c.l.b16 %v725
      %v828 = vunpack.c.l.b16 %v726
      %v829 = vunpack.c.l.b16 %v727
      %v830 = vunpack.c.l.b16 %v728
      %v831 = vunpack.c.l.b16 %v729
      %v832 = vunpack.c.l.b16 %v730
      %v833 = vunpack.c.l.b16 %v731
      %v834 = vunpack.c.l.b16 %v732
      %v835 = vunpack.c.l.b16 %v733
      %v836 = vunpack.c.l.b16 %v734
      %v837 = vunpack.c.l.b16 %v735
      %v838 = vpack.c.b16 %v827, %v826
      %v839 = vpack.c.b16 %v829, %v828
      %v840 = vpack.c.b16 %v831, %v830
      %v841 = vpack.c.b16 %v833, %v832
      %v842 = vpack.c.b16 %v835, %v834
      %v843 = vpack.c.b16 %v837, %v836
      %vm844 = vcmask 785408
      %v846 = vsel %vm844, %v838, 0
      %v849 = vsel %vm844, %v839, 0
      %v852 = vsel %vm844, %v840, 0
      %v855 = vsel %vm844, %v841, 0
      %v858 = vsel %vm844, %v842, 0
      %v861 = vsel %vm844, %v843, 0
      %863 = vmatprep.subr.bf16.mxu0 0
      %864 = vmatpush1.bf16.msra.mxu0 %v736
      %865 = vmatprep.subr.bf16.mxu0 0
      %866 = vmatpush1.bf16.msra.mxu0 %v737
      %867 = vmatprep.subr.bf16.mxu0 0
      %868 = vmatpush1.bf16.msra.mxu0 %v738
      %869 = vmatprep.subr.bf16.mxu0 0
      %870 = vmatpush1.bf16.msra.mxu0 %v739
      %871 = vmatprep.subr.bf16.mxu0 0
      %872 = vmatpush1.bf16.msra.mxu0 %v740
      %873 = vmatprep.subr.bf16.mxu0 0
      %874 = vmatpush1.bf16.msra.mxu0 %v741
      %875 = vmatprep.subr.bf16.mxu0 0
      %876 = vmatpush1.bf16.msra.mxu0 0
      %877 = vmatprep.subr.bf16.mxu0 0
      %878 = vmatpush1.bf16.msra.mxu0 0
      %879 = vmatprep.subr.bf16.mxu0 0
      %880 = vmatpush1.bf16.msra.mxu0 0
      %881 = vmatprep.subr.bf16.mxu0 0
      %882 = vmatpush1.bf16.msra.mxu0 0
      %883 = vmatprep.subr.bf16.mxu0 0
      %884 = vmatpush1.bf16.msra.mxu0 0
      %885 = vmatprep.subr.bf16.mxu0 0
      %886 = vmatpush1.bf16.msra.mxu0 0
      %887 = vmatprep.subr.bf16.mxu0 0
      %888 = vmatpush1.bf16.msra.mxu0 0
      %889 = vmatprep.subr.bf16.mxu0 0
      %890 = vmatpush1.bf16.msra.mxu0 0
      %891 = vmatprep.subr.bf16.mxu0 0
      %892 = vmatpush1.bf16.msra.mxu0 0
      %893 = vmatprep.subr.bf16.mxu0 0
      %894 = vmatpush1.bf16.msra.mxu0 0
      %895 = vmatprep.mubr.bf16.mxu0 0
      %896 = vmatmul.mubr.bf16.gmra.mrb[0].mxu0 %v846
      %v897 = vpop.f32.mrb[0].mxu0
      %v898 = vadd.f32 %v757, %v897
      %v899 = vpop.f32.mrb[0].mxu0
      %v900 = vpop.f32.mrb[0].mxu0
      %v901 = vadd.f32 %v762, %v900
      %v902 = vpop.f32.mrb[0].mxu0
      %903 = vmatprep.mubr.bf16.mxu0 0
      %904 = vmatmul.mubr.bf16.gmra.mrb[0].mxu0 %v849
      %v905 = vpop.f32.mrb[0].mxu0
      %v906 = vadd.f32 %v767, %v905
      %v907 = vpop.f32.mrb[0].mxu0
      %v908 = vpop.f32.mrb[0].mxu0
      %v909 = vadd.f32 %v772, %v908
      %v910 = vpop.f32.mrb[0].mxu0
      %911 = vmatprep.mubr.bf16.mxu0 0
      %912 = vmatmul.mubr.bf16.gmra.mrb[0].mxu0 %v852
      %v913 = vpop.f32.mrb[0].mxu0
      %v914 = vadd.f32 %v777, %v913
      %v915 = vpop.f32.mrb[0].mxu0
      %v916 = vpop.f32.mrb[0].mxu0
      %v917 = vadd.f32 %v782, %v916
      %v918 = vpop.f32.mrb[0].mxu0
      %919 = vmatprep.mubr.bf16.mxu0 0
      %920 = vmatmul.mubr.bf16.gmra.mrb[0].mxu0 %v855
      %v921 = vpop.f32.mrb[0].mxu0
      %v922 = vadd.f32 %v787, %v921
      %v923 = vpop.f32.mrb[0].mxu0
      %v924 = vpop.f32.mrb[0].mxu0
      %v925 = vadd.f32 %v792, %v924
      %v926 = vpop.f32.mrb[0].mxu0
      %927 = vmatprep.mubr.bf16.mxu0 0
      %928 = vmatmul.mubr.bf16.gmra.mrb[0].mxu0 %v858
      %v929 = vpop.f32.mrb[0].mxu0
      %v930 = vadd.f32 %v797, %v929
      %v931 = vpop.f32.mrb[0].mxu0
      %v932 = vpop.f32.mrb[0].mxu0
      %v933 = vadd.f32 %v802, %v932
      %v934 = vpop.f32.mrb[0].mxu0
      %935 = vmatprep.mubr.bf16.mxu0 0
      %936 = vmatmul.mubr.bf16.gmra.mrb[0].mxu0 %v861
      %v937 = vpop.f32.mrb[0].mxu0
      %v938 = vadd.f32 %v807, %v937
      %v939 = vpop.f32.mrb[0].mxu0
      %v940 = vpop.f32.mrb[0].mxu0
      %v941 = vadd.f32 %v812, %v940
      %v942 = vpop.f32.mrb[0].mxu0
      %943 = vdwg.mxu0
      %v944 = vmul.f32 %v898, 0.1
      %v945 = vmul.f32 %v901, 0.1
      %v946 = vmul.f32 %v906, 0.1
      %v947 = vmul.f32 %v909, 0.1
      %v948 = vmul.f32 %v914, 0.1
      %v949 = vmul.f32 %v917, 0.1
      %v950 = vmul.f32 %v922, 0.1
      %v951 = vmul.f32 %v925, 0.1
      %v952 = vmul.f32 %v930, 0.1
      %v953 = vmul.f32 %v933, 0.1
      %v954 = vmul.f32 %v938, 0.1
      %v955 = vmul.f32 %v941, 0.1
      %v956 = vmax.f32 %v898, %v944
      %v957 = vmax.f32 %v901, %v945
      %v958 = vmax.f32 %v906, %v946
      %v959 = vmax.f32 %v909, %v947
      %v960 = vmax.f32 %v914, %v948
      %v961 = vmax.f32 %v917, %v949
      %v962 = vmax.f32 %v922, %v950
      %v963 = vmax.f32 %v925, %v951
      %v964 = vmax.f32 %v930, %v952
      %v965 = vmax.f32 %v933, %v953
      %v966 = vmax.f32 %v938, %v954
      %v967 = vmax.f32 %v941, %v955
      %v968 = vld [vmem:[%s7] sm:$0xf]
      %v969 = vld [vmem:[%s7 + $0x4] sm:$0xf]
      %v970 = vld [vmem:[%s7 + $0x8] sm:$0xf]
      %v971 = vld [vmem:[%s7 + $0xc] sm:$0xf]
      %v972 = vld [vmem:[%s7 + $0x10] sm:$0xf]
      %v973 = vld [vmem:[%s7 + $0x14] sm:$0xf]
      %v974 = vpack.c.bf16 %v957, %v956
      %v975 = vpack.c.bf16 %v959, %v958
      %v976 = vpack.c.bf16 %v961, %v960
      %v977 = vpack.c.bf16 %v963, %v962
      %v978 = vpack.c.bf16 %v965, %v964
      %v979 = vpack.c.bf16 %v967, %v966
      %v980 = vld [vmem:[%s8] sm:$0xff]
      %v981 = vld [vmem:[%s8 + $0x8] sm:$0xff]
      %v982 = vld [vmem:[%s8 + $0x10] sm:$0xff]
      %v983 = vld [vmem:[%s8 + $0x18] sm:$0xff]
      %v984 = vld [vmem:[%s8 + $0x20] sm:$0xff]
      %v985 = vld [vmem:[%s8 + $0x28] sm:$0xff]
      %987 = vset.pattern.permute.xlu0 0
      %988 = vperm.xlu0 %987, %v980
      %v989 = vpop.permute.xlu0 %988
      %992 = vset.pattern.permute.xlu0 0
      %993 = vperm.xlu0 %992, %v981
      %v994 = vpop.permute.xlu0 %993
      %997 = vset.pattern.permute.xlu0 0
      %998 = vperm.xlu0 %997, %v982
      %v999 = vpop.permute.xlu0 %998
      %1002 = vset.pattern.permute.xlu0 0
      %1003 = vperm.xlu0 %1002, %v983
      %v1004 = vpop.permute.xlu0 %1003
      %1007 = vset.pattern.permute.xlu0 0
      %1008 = vperm.xlu0 %1007, %v984
      %v1009 = vpop.permute.xlu0 %1008
      %1012 = vset.pattern.permute.xlu0 0
      %1013 = vperm.xlu0 %1012, %v985
      %v1014 = vpop.permute.xlu0 %1013
      %v1022 = vunpack.c.l.b16 %v968
      %v1023 = vunpack.c.l.b16 %v969
      %v1024 = vunpack.c.l.b16 %v970
      %v1025 = vunpack.c.l.b16 %v971
      %v1026 = vunpack.c.l.b16 %v972
      %v1027 = vunpack.c.l.b16 %v973
      %v1028 = vpack.c.b16 %v1023, %v1022
      %v1029 = vpack.c.b16 %v1025, %v1024
      %v1030 = vpack.c.b16 %v1027, %v1026
      %v1032 = vsel %vm844, %v1028, 0
      %v1035 = vsel %vm844, %v1029, 0
      %v1038 = vsel %vm844, %v1030, 0
      %1040 = vmatprep.subr.bf16.mxu0 0
      %1041 = vmatpush1.bf16.msra.mxu0 %v974
      %1042 = vmatprep.subr.bf16.mxu0 0
      %1043 = vmatpush1.bf16.msra.mxu0 %v975
      %1044 = vmatprep.subr.bf16.mxu0 0
      %1045 = vmatpush1.bf16.msra.mxu0 %v976
      %1046 = vmatprep.subr.bf16.mxu0 0
      %1047 = vmatpush1.bf16.msra.mxu0 %v977
      %1048 = vmatprep.subr.bf16.mxu0 0
      %1049 = vmatpush1.bf16.msra.mxu0 %v978
      %1050 = vmatprep.subr.bf16.mxu0 0
      %1051 = vmatpush1.bf16.msra.mxu0 %v979
      %1052 = vmatprep.subr.bf16.mxu0 0
      %1053 = vmatpush1.bf16.msra.mxu0 0
      %1054 = vmatprep.subr.bf16.mxu0 0
      %1055 = vmatpush1.bf16.msra.mxu0 0
      %1056 = vmatprep.subr.bf16.mxu0 0
      %1057 = vmatpush1.bf16.msra.mxu0 0
      %1058 = vmatprep.subr.bf16.mxu0 0
      %1059 = vmatpush1.bf16.msra.mxu0 0
      %1060 = vmatprep.subr.bf16.mxu0 0
      %1061 = vmatpush1.bf16.msra.mxu0 0
      %1062 = vmatprep.subr.bf16.mxu0 0
      %1063 = vmatpush1.bf16.msra.mxu0 0
      %1064 = vmatprep.subr.bf16.mxu0 0
      %1065 = vmatpush1.bf16.msra.mxu0 0
      %1066 = vmatprep.subr.bf16.mxu0 0
      %1067 = vmatpush1.bf16.msra.mxu0 0
      %1068 = vmatprep.subr.bf16.mxu0 0
      %1069 = vmatpush1.bf16.msra.mxu0 0
      %1070 = vmatprep.subr.bf16.mxu0 0
      %1071 = vmatpush1.bf16.msra.mxu0 0
      %1072 = vmatprep.mubr.bf16.mxu0 0
      %1073 = vmatmul.mubr.bf16.gmra.mrb[0].mxu0 %v1032
      %v1074 = vpop.f32.mrb[0].mxu0
      %v1075 = vadd.f32 %v989, %v1074
      %v1076 = vpop.f32.mrb[0].mxu0
      %v1077 = vpop.f32.mrb[0].mxu0
      %v1078 = vadd.f32 %v994, %v1077
      %v1079 = vpop.f32.mrb[0].mxu0
      %1080 = vmatprep.mubr.bf16.mxu0 0
      %1081 = vmatmul.mubr.bf16.gmra.mrb[0].mxu0 %v1035
      %v1082 = vpop.f32.mrb[0].mxu0
      %v1083 = vadd.f32 %v999, %v1082
      %v1084 = vpop.f32.mrb[0].mxu0
      %v1085 = vpop.f32.mrb[0].mxu0
      %v1086 = vadd.f32 %v1004, %v1085
      %v1087 = vpop.f32.mrb[0].mxu0
      %1088 = vmatprep.mubr.bf16.mxu0 0
      %1089 = vmatmul.mubr.bf16.gmra.mrb[0].mxu0 %v1038
      %v1090 = vpop.f32.mrb[0].mxu0
      %v1091 = vadd.f32 %v1009, %v1090
      %v1092 = vpop.f32.mrb[0].mxu0
      %v1093 = vpop.f32.mrb[0].mxu0
      %v1094 = vadd.f32 %v1014, %v1093
      %v1095 = vpop.f32.mrb[0].mxu0
      %1096 = vdwg.mxu0
      %v1097 = vmul.f32 %v1075, 0.1
      %v1098 = vmul.f32 %v1078, 0.1
      %v1099 = vmul.f32 %v1083, 0.1
      %v1100 = vmul.f32 %v1086, 0.1
      %v1101 = vmul.f32 %v1091, 0.1
      %v1102 = vmul.f32 %v1094, 0.1
      %v1103 = vmax.f32 %v1075, %v1097
      %v1104 = vmax.f32 %v1078, %v1098
      %v1105 = vmax.f32 %v1083, %v1099
      %v1106 = vmax.f32 %v1086, %v1100
      %v1107 = vmax.f32 %v1091, %v1101
      %v1108 = vmax.f32 %v1094, %v1102
      %v1109 = vld [vmem:[%s9] sm:$0xff]
      %v1110 = vld [vmem:[%s9 + $0x8] sm:$0xff]
      %v1111 = vld [vmem:[%s9 + $0x10] sm:$0xff]
      %v1112 = vld [vmem:[%s9 + $0x18] sm:$0xff]
      %v1113 = vld [vmem:[%s9 + $0x20] sm:$0xff]
      %v1114 = vld [vmem:[%s9 + $0x28] sm:$0xff]
      %1116 = vset.pattern.permute.xlu0 0
      %1117 = vperm.xlu0 %1116, %v1109
      %v1118 = vpop.permute.xlu0 %1117
      %1121 = vset.pattern.permute.xlu0 0
      %1122 = vperm.xlu0 %1121, %v1110
      %v1123 = vpop.permute.xlu0 %1122
      %1126 = vset.pattern.permute.xlu0 0
      %1127 = vperm.xlu0 %1126, %v1111
      %v1128 = vpop.permute.xlu0 %1127
      %1131 = vset.pattern.permute.xlu0 0
      %1132 = vperm.xlu0 %1131, %v1112
      %v1133 = vpop.permute.xlu0 %1132
      %1136 = vset.pattern.permute.xlu0 0
      %1137 = vperm.xlu0 %1136, %v1113
      %v1138 = vpop.permute.xlu0 %1137
      %1141 = vset.pattern.permute.xlu0 0
      %1142 = vperm.xlu0 %1141, %v1114
      %v1143 = vpop.permute.xlu0 %1142
      %v1145 = vmul.f32 %v1118, %v1103
      %v1146 = vmul.f32 %v1123, %v1104
      %v1147 = vmul.f32 %v1128, %v1105
      %v1148 = vmul.f32 %v1133, %v1106
      %v1149 = vmul.f32 %v1138, %v1107
      %v1150 = vmul.f32 %v1143, %v1108
      %v1151 = vadd.f32 %v1145, %v1146
      %v1152 = vadd.f32 %v1151, %v1147
      %v1153 = vadd.f32 %v1152, %v1148
      %v1154 = vadd.f32 %v1153, %v1149
      %v1155 = vadd.f32 %v1154, %v1150
      %v1156 = vrot.slane %v1155, 4
      %v1157 = vadd.f32 %v1155, %v1156
      %v1158 = vrot.slane %v1157, 2
      %v1159 = vadd.f32 %v1157, %v1158
      %v1160 = vrot.slane %v1159, 1
      %v1161 = vadd.f32 %v1159, %v1160
      %v1162 = vld [vmem:[#allocation2] sm:$0x1]
      %1164 = vset.pattern.permute.xlu0 0
      %1165 = vperm.xlu0 %1164, %v1162
      %v1166 = vpop.permute.xlu0 %1165
      %v1168 = vlaneseq
      %v1169 = vshrl.u32 %v1168, 7
      %v1170 = vsub.s32 0, %v1169
      %v1171 = vrot.slane %v1166, %v1170
      %v1172 = vadd.f32 %v1161, %v1171
      %1173 = vst [vmem:[%s378] sm:$0x1] %v1172
      %p1174 = scmp.lt.s32.totalorder %s24, 1
      %s1175 = scalar_select %p1174, %s24, 1
      %s1176 = scalar_lea.vmem %s11, %s1175
      // Predicated region
      $region65: #{subnetwork_forward.1} parent=63 // pred_check
        %p1177 = pneg %p278
      $region66: #{subnetwork_forward.1} parent=63 // pred_check_branch
        %1179 = sbr.rel (%p1177) target = $region68
      $region67: #{subnetwork_forward.1} parent=63 // pred_region
        _
      $region68: #{subnetwork_forward.1} parent=63 // pred_fallthru
        _
    $region64: #{subnetwork_forward.1} parent=5 // pred_fallthru
      _
    %p1180 = scmp.le.s32.totalorder 2, %s19
    // Predicated region
    $region69: #{subnetwork_forward.1} parent=5 // pred_check
      %p1181 = pneg %p1180
    $region70: #{subnetwork_forward.1} parent=5 // pred_check_branch
      %1183 = sbr.rel (%p1181) target = $region72
    $region71: #{subnetwork_forward.1} parent=5 // pred_region
      %s1184 = ssub.s32 %s19, 2
      // Predicated region
      $region73: #{subnetwork_forward.1} parent=71 // pred_check
        %p1185 = pneg %p284
      $region74: #{subnetwork_forward.1} parent=71 // pred_check_branch
        %1187 = sbr.rel (%p1185) target = $region76
      $region75: #{subnetwork_forward.1} parent=71 // pred_region
        %p1188 = scmp.lt.s32.totalorder %s25, 1
        %s1189 = scalar_select %p1188, %s25, 1
        %s1190 = scalar_lea.vmem %s11, %s1189
      $region76: #{subnetwork_forward.1} parent=71 // pred_fallthru
        _
    $region72: #{subnetwork_forward.1} parent=5 // pred_fallthru
      _
  $region6: #{subnetwork_forward.1} parent=0 // loop_footer
    %s23 = sadd.s32 1, %s19
  $region7: #{subnetwork_forward.1} parent=0 // loop_footer_branch
    %18 = sbr.rel target = $region3
  $region8: #{subnetwork_forward.1} parent=0 // loop_exit
    _

</llo_original>
